<compile_context>
chip_gen: v6e
topology: v6e:2x2x1
jax: 0.10.0
libtpu: 0.0.40
codegen_flags: <defaults>
</compile_context>

<pallas_src>
import functools
import math

import numpy as np
import jax
import jax.numpy as jnp
from jax.experimental import pallas as pl
from jax.experimental.pallas import tpu as pltpu

_SQRT_2_OVER_PI = 0.7978845608028654


def _apply_act(x, act_type):
    """Elementwise activation, traced inside the kernel on the f32 accumulator."""
    if act_type == "relu":
        return jnp.maximum(x, 0.0)
    if act_type == "leaky":
        return jnp.where(x >= 0.0, x, 0.01 * x)
    if act_type == "leaky01":
        return jnp.where(x >= 0.0, x, 0.1 * x)
    if act_type == "relu6":
        return jnp.minimum(jnp.maximum(x, 0.0), 6.0)
    if act_type == "gelu":
        # TODO(synk): PyTorch nn.GELU() defaults to the exact erf form; the tanh
        # approximation is used here (max abs error ~3e-4).  On v5e, the
        # x*sigmoid(1.702x) form moves work to the EUP if the VALU ever saturates.
        return 0.5 * x * (1.0 + jnp.tanh(_SQRT_2_OVER_PI * (x + 0.044715 * x * x * x)))
    if act_type == "swish":
        return x * jax.nn.sigmoid(x)
    if act_type == "softplus":
        return jnp.maximum(x, 0.0) + jnp.log(1.0 + jnp.exp(-jnp.abs(x)))
    if act_type == "hardswish":
        return x * jnp.minimum(jnp.maximum(x + 3.0, 0.0), 6.0) * (1.0 / 6.0)
    raise KeyError(f"Unknown activation function {act_type}.")


def _round_up(x, m):
    return ((x + m - 1) // m) * m


def _lcm(a, b):
    return a * b // math.gcd(a, b)


# ----------------------------------------------------------------------------
# Pallas kernel: in-VMEM im2col (K*K lane-shifted taps) + one MXU matmul
#                + bias + activation, all on the f32 accumulator.
# ----------------------------------------------------------------------------
def _conv_bias_act_kernel(src_ref, halo_ref, w_ref, b_ref, m_ref, o_ref, *,
                          K, W, pad, act_type):
    # src_ref : (Cin, thw)       current flattened-spatial block (streamed).
    # halo_ref: (Cin, thw)       next block of the same array (halo for tap shifts).
    # w_ref   : (Cout, K*K*Cin)  resident weights (constant index_map).
    # b_ref   : (Cout, 1)        resident f32 bias.
    # m_ref   : (K, thw)         resident 0/1 column-validity masks (per dx).
    # o_ref   : (Cout, thw)      lane-dense output block.
    thw = src_ref.shape[1]
    window = jnp.concatenate([src_ref[...], halo_ref[...]], axis=1)   # (Cin, 2*thw)

    taps = []
    for dy in range(K):
        for dx in range(K):
            s = dy * W + dx                      # constant lane shift of this tap
            t = window[:, s:s + thw]             # (Cin, thw)
            if dx != pad:                        # zero the columns that crossed a row
                t = t * m_ref[dx:dx + 1, :]
            taps.append(t)
    rhs = jnp.concatenate(taps, axis=0)          # (K*K*Cin, thw) in-VMEM im2col

    acc = jnp.dot(w_ref[...], rhs, preferred_element_type=jnp.float32)
    acc = acc + b_ref[...]                       # broadcast (Cout, 1) over lanes
    o_ref[...] = _apply_act(acc, act_type).astype(o_ref.dtype)


# ----------------------------------------------------------------------------
# VMEM-budget-aware lane-tile selection.
# ----------------------------------------------------------------------------
def _pick_tile(*, W, K, total, cin, cout, ck, in_bytes, out_bytes,
               vmem_budget_bytes, min_parallel=4, max_tile=4096):
    base = _lcm(W, 128)                     # lane-dense (128) and row-aligned (W)
    smax = (K - 1) * (W + 1)                # largest tap shift
    min_t = _round_up(max(smax, base), base)

    # Per-lane VMEM: 2 streamed src specs (double-buffered) + output (double-
    # buffered) + in-kernel window/rhs temporaries (~2*Cin + 2*CK) + masks + acc.
    per_lane = (6 * cin + 2 * ck + K) * in_bytes + 2 * cout * out_bytes + 4 * cout
    resident = cout * ck * in_bytes + 8 * cout
    t_budget = (max(vmem_budget_bytes - resident, 0) // max(per_lane, 1)) // base * base

    # Keep >= min_parallel grid steps when the data allows it (v7x has 2 TCs).
    t_par = (pl.cdiv(total, min_parallel)) // base * base
    cap = max(max_tile // base, 1) * base

    t = min(t_budget, t_par, cap, _round_up(total, base))
    return max(t, min_t)


# ----------------------------------------------------------------------------
# Stride-1 KxK "same" conv (PyTorch cross-correlation semantics) + bias + act.
# ----------------------------------------------------------------------------
def conv2d_bias_act(x, weight, bias, *, padding, act_type,
                    compute_dtype=jnp.bfloat16,
                    vmem_budget_bytes=24 << 20,
                    vmem_limit_bytes=48 << 20):
    """x: (N, Cin, H, W) NCHW.  weight: (Cout, Cin, K, K).  bias: (Cout,) or None.

    Returns (N, Cout, H, W) in x.dtype.  Matmuls run in `compute_dtype` with f32
    accumulation; bias/activation applied on the f32 accumulator in-kernel.
    """
    N, Cin, H, W = x.shape
    Cout, Cin_w, K, K2 = weight.shape
    assert Cin_w == Cin and K == K2
    assert K % 2 == 1 and padding == (K - 1) // 2, "stride-1 'same' conv only"
    pad = padding
    HW = H * W
    Hp = H + 2 * pad
    CK = K * K * Cin

    # Per-image flattened source segment: [pad zeros | H-halo'd rows | zero tail],
    # length Lseg (multiple of W) so that all K*K taps of every real output index
    # stay inside the image's own segment and constant lane shifts work across N.
    lseg = _round_up(HW + 2 * pad * (W + 1), W)
    xh = jnp.pad(x, ((0, 0), (0, 0), (pad, pad), (0, 0)))            # H halo (1x copy)
    src = jnp.pad(xh.reshape(N, Cin, Hp * W),
                  ((0, 0), (0, 0), (pad, lseg - pad - Hp * W)))
    # Fold N into the flattened lane axis: (Cin, N*Lseg).
    src = jnp.transpose(src, (1, 0, 2)).reshape(Cin, N * lseg).astype(compute_dtype)

    in_b = jnp.dtype(compute_dtype).itemsize
    out_b = jnp.dtype(x.dtype).itemsize
    total = N * lseg
    thw = _pick_tile(W=W, K=K, total=total, cin=Cin, cout=Cout, ck=CK,
                     in_bytes=in_b, out_bytes=out_b,
                     vmem_budget_bytes=vmem_budget_bytes)
    n_tiles = pl.cdiv(total, thw)
    # Pad so block j+1 (the halo read) always exists, even for the last tile.
    src = jnp.pad(src, ((0, 0), (0, (n_tiles + 1) * thw - total)))

    # Weights in (dy, dx, ci) tap-major order to match the in-kernel concat; bias f32.
    w2 = jnp.transpose(weight, (0, 2, 3, 1)).reshape(Cout, CK).astype(compute_dtype)
    b = jnp.zeros((Cout,), jnp.float32) if bias is None else bias
    b2 = b.reshape(Cout, 1).astype(jnp.float32)

    # Column-validity masks per dx (resident, tiny).  thw % W == 0 and every tile /
    # image segment starts at a multiple of W, so (local index mod W) == column.
    col = np.arange(thw) % W
    masks = np.stack([((col + dx - pad >= 0) & (col + dx - pad < W)).astype(np.float32)
                      for dx in range(K)])
    masks = jnp.asarray(masks).astype(compute_dtype)                  # (K, thw)

    kernel = functools.partial(_conv_bias_act_kernel,
                               K=K, W=W, pad=pad, act_type=act_type)
    out = pl.pallas_call(
        kernel,
        out_shape=jax.ShapeDtypeStruct((Cout, n_tiles * thw), x.dtype),
        grid_spec=pltpu.PrefetchScalarGridSpec(
            num_scalar_prefetch=0,
            grid=(n_tiles,),
            in_specs=[
                pl.BlockSpec((Cin, thw), lambda j: (0, j)),        # streamed block
                pl.BlockSpec((Cin, thw), lambda j: (0, j + 1)),    # halo = next block
                pl.BlockSpec((Cout, CK), lambda j: (0, 0)),        # resident weights
                pl.BlockSpec((Cout, 1), lambda j: (0, 0)),         # resident bias
                pl.BlockSpec((K, thw), lambda j: (0, 0)),          # resident masks
            ],
            out_specs=pl.BlockSpec((Cout, thw), lambda j: (0, j)),
        ),
        compiler_params=pltpu.CompilerParams(
            dimension_semantics=("parallel",),
            vmem_limit_bytes=vmem_limit_bytes),
    )(src, src, w2, b2, masks)

    # Strip segment tails / global padding, unfold N, back to NCHW.
    out = out[:, :total].reshape(Cout, N, lseg)[:, :, :HW]
    out = jnp.transpose(out.reshape(Cout, N, H, W), (1, 0, 2, 3))
    return out


# ----------------------------------------------------------------------------
# Pixel (un)shuffle: pure layout permutations (wrapper glue, matches PyTorch).
# ----------------------------------------------------------------------------
def pixel_shuffle(x, r):
    N, C, H, W = x.shape
    c = C // (r * r)
    x = x.reshape(N, c, r, r, H, W)
    x = jnp.transpose(x, (0, 1, 4, 2, 5, 3))
    return x.reshape(N, c, H * r, W * r)


def pixel_unshuffle(x, r):
    N, C, H, W = x.shape
    h, w = H // r, W // r
    x = x.reshape(N, C, h, r, w, r)
    x = jnp.transpose(x, (0, 1, 3, 5, 2, 4))
    return x.reshape(N, C * r * r, h, w)


# ----------------------------------------------------------------------------
# NeRVBlock forward.
# ----------------------------------------------------------------------------
def nerv_block_forward(x, weight, bias, *, dec_block, strd, ks,
                       conv_type="pshuffel", norm="none", act="gelu",
                       compute_dtype=jnp.bfloat16):
    """NeRVBlock.forward(x) = act(norm(conv(x))) for the 'pshuffel' conv path."""
    if conv_type != "pshuffel":
        raise NotImplementedError(conv_type)   # TODO(synk): 'conv' / 'interpolate'
    if norm != "none":
        raise NotImplementedError(norm)        # TODO(synk): 'bn' / 'in'

    pad = (ks - 1) // 2
    if dec_block:
        # UpConv: Conv2d -> PixelShuffle.  Norm is identity and the activation is
        # elementwise, so fusing it into the conv kernel (before the pure
        # permutation PixelShuffle) is exactly equivalent to the PyTorch order.
        y = conv2d_bias_act(x, weight, bias, padding=pad, act_type=act,
                            compute_dtype=compute_dtype)
        return pixel_shuffle(y, strd) if strd != 1 else y
    else:
        # DownConv: PixelUnshuffle -> Conv2d (activation fused in the kernel).
        z = pixel_unshuffle(x, strd) if strd != 1 else x
        return conv2d_bias_act(z, weight, bias, padding=pad, act_type=act,
                               compute_dtype=compute_dtype)


# ----------------------------------------------------------------------------
# Pure-JAX reference mirroring the PyTorch forward (f32, HIGHEST precision).
# ----------------------------------------------------------------------------
def _reference_forward(x, weight, bias, *, dec_block, strd, ks, act):
    pad = (ks - 1) // 2

    def conv(z):
        out = jax.lax.conv_general_dilated(
            z, weight, window_strides=(1, 1),
            padding=[(pad, pad), (pad, pad)],
            dimension_numbers=("NCHW", "OIHW", "NCHW"),
            precision=jax.lax.Precision.HIGHEST)
        if bias is not None:
            out = out + bias.reshape(1, -1, 1, 1)
        return out

    if dec_block:
        y = conv(x)
        y = pixel_shuffle(y, strd) if strd != 1 else y
    else:
        z = pixel_unshuffle(x, strd) if strd != 1 else x
        y = conv(z)
    return _apply_act(y, act)


if __name__ == "__main__":
    key = jax.random.PRNGKey(0)
    k1, k2, k3, k4, k5, k6 = jax.random.split(key, 6)

    # --- decoder block (dec_block=True): ngf=32 -> new_ngf=16, strd=2, ks=3 ---
    N, ngf, H, W = 2, 32, 16, 16
    new_ngf, strd, ks = 16, 2, 3
    cout = new_ngf * strd * strd                       # conv output channels = 64
    bound = 1.0 / ((ngf * ks * ks) ** 0.5)
    x_dec = jax.random.normal(k1, (N, ngf, H, W), dtype=jnp.float32)
    w_dec = jax.random.uniform(k2, (cout, ngf, ks, ks), jnp.float32, -bound, bound)
    b_dec = jax.random.uniform(k3, (cout,), jnp.float32, -bound, bound)

    ref_dec = _reference_forward(x_dec, w_dec, b_dec,
                                 dec_block=True, strd=strd, ks=ks, act="gelu")

    # bf16 compute (the recommended v6e/v7x config) -- loose tolerance.
    y_dec = jax.block_until_ready(nerv_block_forward(
        x_dec, w_dec, b_dec, dec_block=True, strd=strd, ks=ks, act="gelu",
        compute_dtype=jnp.bfloat16))
    assert y_dec.shape == (N, new_ngf, H * strd, W * strd)
    assert float(jnp.max(jnp.abs(y_dec - ref_dec))) < 5e-2

    # f32 compute -- tighter tolerance (still robust to MXU multi-pass rounding).
    y_dec32 = jax.block_until_ready(nerv_block_forward(
        x_dec, w_dec, b_dec, dec_block=True, strd=strd, ks=ks, act="gelu",
        compute_dtype=jnp.float32))
    assert float(jnp.max(jnp.abs(y_dec32 - ref_dec))) < 2e-2

    # --- encoder block (dec_block=False): ngf=4 -> new_ngf=32, strd=2, ks=3 ---
    ngf_e, new_ngf_e = 4, 32
    x_enc = jax.random.normal(k4, (N, ngf_e, H, W), dtype=jnp.float32)
    cin_e = ngf_e * strd * strd                        # 16 after PixelUnshuffle
    bound_e = 1.0 / ((cin_e * ks * ks) ** 0.5)
    w_enc = jax.random.uniform(k5, (new_ngf_e, cin_e, ks, ks), jnp.float32, -bound_e, bound_e)
    b_enc = jax.random.uniform(k6, (new_ngf_e,), jnp.float32, -bound_e, bound_e)

    y_enc = jax.block_until_ready(nerv_block_forward(
        x_enc, w_enc, b_enc, dec_block=False, strd=strd, ks=ks, act="gelu",
        compute_dtype=jnp.bfloat16))
    ref_enc = _reference_forward(x_enc, w_enc, b_enc,
                                 dec_block=False, strd=strd, ks=ks, act="gelu")
    assert y_enc.shape == (N, new_ngf_e, H // strd, W // strd)
    assert float(jnp.max(jnp.abs(y_enc - ref_enc))) < 5e-2

    print("KERNEL_OK")
</pallas_src>

<mosaic_0001>
module attributes {stable_mosaic.version = 11 : i64} {
  func.func @_conv_bias_act_kernel(%arg0: i32, %arg1: memref<32x128xbf16, #tpu.memory_space<vmem>>, %arg2: memref<32x128xbf16, #tpu.memory_space<vmem>>, %arg3: memref<64x288xbf16, #tpu.memory_space<vmem>>, %arg4: memref<64x1xf32, #tpu.memory_space<vmem>>, %arg5: memref<3x128xbf16, #tpu.memory_space<vmem>>, %arg6: memref<64x128xf32, #tpu.memory_space<vmem>>) attributes {dimension_semantics = [#tpu.dimension_semantics<parallel>], iteration_bounds = array<i64: 5>, scalar_prefetch = 0 : i64, scratch_operands = 0 : i64, tpu.core_type = #tpu.core_type<tc>, window_params = [{transform_indices = @transform_0, window_bounds = array<i64: 32, 128>}, {transform_indices = @transform_1, window_bounds = array<i64: 32, 128>}, {pipeline_mode = #tpu.pipeline_mode<synchronous>, transform_indices = @transform_2, window_bounds = array<i64: 64, 288>}, {pipeline_mode = #tpu.pipeline_mode<synchronous>, transform_indices = @transform_3, window_bounds = array<i64: 64, 1>}, {pipeline_mode = #tpu.pipeline_mode<synchronous>, transform_indices = @transform_4, window_bounds = array<i64: 3, 128>}, {transform_indices = @transform_5, window_bounds = array<i64: 64, 128>}]} {
    %c0 = arith.constant 0 : index
    %c0_0 = arith.constant 0 : index
    %0 = vector.load %arg1[%c0, %c0_0] : memref<32x128xbf16, #tpu.memory_space<vmem>>, vector<32x128xbf16>
    %c0_1 = arith.constant 0 : index
    %c0_2 = arith.constant 0 : index
    %1 = vector.load %arg2[%c0_1, %c0_2] : memref<32x128xbf16, #tpu.memory_space<vmem>>, vector<32x128xbf16>
    %2 = tpu.concatenate %0, %1 in 1 : vector<32x128xbf16>, vector<32x128xbf16> -> vector<32x256xbf16>
    %3 = vector.extract_strided_slice %2 {offsets = [0, 0], sizes = [32, 128], strides = [1, 1]} : vector<32x256xbf16> to vector<32x128xbf16>
    %c0_3 = arith.constant 0 : index
    %c0_4 = arith.constant 0 : index
    %4 = vector.load %arg5[%c0_3, %c0_4] : memref<3x128xbf16, #tpu.memory_space<vmem>>, vector<1x128xbf16>
    %5 = vector.broadcast %4 : vector<1x128xbf16> to vector<32x128xbf16>
    %6 = arith.mulf %3, %5 : vector<32x128xbf16>
    %7 = vector.extract_strided_slice %2 {offsets = [0, 1], sizes = [32, 128], strides = [1, 1]} : vector<32x256xbf16> to vector<32x128xbf16>
    %8 = vector.extract_strided_slice %2 {offsets = [0, 2], sizes = [32, 128], strides = [1, 1]} : vector<32x256xbf16> to vector<32x128xbf16>
    %c2 = arith.constant 2 : index
    %c0_5 = arith.constant 0 : index
    %9 = vector.load %arg5[%c2, %c0_5] : memref<3x128xbf16, #tpu.memory_space<vmem>>, vector<1x128xbf16>
    %10 = vector.broadcast %9 : vector<1x128xbf16> to vector<32x128xbf16>
    %11 = arith.mulf %8, %10 : vector<32x128xbf16>
    %12 = vector.extract_strided_slice %2 {offsets = [0, 16], sizes = [32, 128], strides = [1, 1]} : vector<32x256xbf16> to vector<32x128xbf16>
    %c0_6 = arith.constant 0 : index
    %c0_7 = arith.constant 0 : index
    %13 = vector.load %arg5[%c0_6, %c0_7] : memref<3x128xbf16, #tpu.memory_space<vmem>>, vector<1x128xbf16>
    %14 = vector.broadcast %13 : vector<1x128xbf16> to vector<32x128xbf16>
    %15 = arith.mulf %12, %14 : vector<32x128xbf16>
    %16 = vector.extract_strided_slice %2 {offsets = [0, 17], sizes = [32, 128], strides = [1, 1]} : vector<32x256xbf16> to vector<32x128xbf16>
    %17 = vector.extract_strided_slice %2 {offsets = [0, 18], sizes = [32, 128], strides = [1, 1]} : vector<32x256xbf16> to vector<32x128xbf16>
    %c2_8 = arith.constant 2 : index
    %c0_9 = arith.constant 0 : index
    %18 = vector.load %arg5[%c2_8, %c0_9] : memref<3x128xbf16, #tpu.memory_space<vmem>>, vector<1x128xbf16>
    %19 = vector.broadcast %18 : vector<1x128xbf16> to vector<32x128xbf16>
    %20 = arith.mulf %17, %19 : vector<32x128xbf16>
    %21 = vector.extract_strided_slice %2 {offsets = [0, 32], sizes = [32, 128], strides = [1, 1]} : vector<32x256xbf16> to vector<32x128xbf16>
    %c0_10 = arith.constant 0 : index
    %c0_11 = arith.constant 0 : index
    %22 = vector.load %arg5[%c0_10, %c0_11] : memref<3x128xbf16, #tpu.memory_space<vmem>>, vector<1x128xbf16>
    %23 = vector.broadcast %22 : vector<1x128xbf16> to vector<32x128xbf16>
    %24 = arith.mulf %21, %23 : vector<32x128xbf16>
    %25 = vector.extract_strided_slice %2 {offsets = [0, 33], sizes = [32, 128], strides = [1, 1]} : vector<32x256xbf16> to vector<32x128xbf16>
    %26 = vector.extract_strided_slice %2 {offsets = [0, 34], sizes = [32, 128], strides = [1, 1]} : vector<32x256xbf16> to vector<32x128xbf16>
    %c2_12 = arith.constant 2 : index
    %c0_13 = arith.constant 0 : index
    %27 = vector.load %arg5[%c2_12, %c0_13] : memref<3x128xbf16, #tpu.memory_space<vmem>>, vector<1x128xbf16>
    %28 = vector.broadcast %27 : vector<1x128xbf16> to vector<32x128xbf16>
    %29 = arith.mulf %26, %28 : vector<32x128xbf16>
    %30 = tpu.concatenate %6, %7, %11, %15, %16, %20, %24, %25, %29 in 0 : vector<32x128xbf16>, vector<32x128xbf16>, vector<32x128xbf16>, vector<32x128xbf16>, vector<32x128xbf16>, vector<32x128xbf16>, vector<32x128xbf16>, vector<32x128xbf16>, vector<32x128xbf16> -> vector<288x128xbf16>
    %c0_14 = arith.constant 0 : index
    %c0_15 = arith.constant 0 : index
    %31 = vector.load %arg3[%c0_14, %c0_15] : memref<64x288xbf16, #tpu.memory_space<vmem>>, vector<64x288xbf16>
    %cst = arith.constant dense<0.000000e+00> : vector<64x128xf32>
    %32 = tpu.matmul %31, %30, %cst {dimension_numbers = #tpu.dot_dimension_numbers<[1], [0], [0], [1], [0, 0, 1, 1], [], []>} : vector<64x288xbf16>, vector<288x128xbf16>, vector<64x128xf32> -> vector<64x128xf32>
    %c0_16 = arith.constant 0 : index
    %c0_17 = arith.constant 0 : index
    %33 = vector.load %arg4[%c0_16, %c0_17] : memref<64x1xf32, #tpu.memory_space<vmem>>, vector<64x1xf32>
    %34 = vector.broadcast %33 : vector<64x1xf32> to vector<64x128xf32>
    %35 = arith.addf %32, %34 : vector<64x128xf32>
    %cst_18 = arith.constant 5.000000e-01 : f32
    %36 = vector.broadcast %cst_18 : f32 to vector<64x128xf32>
    %37 = arith.mulf %36, %35 : vector<64x128xf32>
    %cst_19 = arith.constant 4.471500e-02 : f32
    %38 = vector.broadcast %cst_19 : f32 to vector<64x128xf32>
    %39 = arith.mulf %38, %35 : vector<64x128xf32>
    %40 = arith.mulf %39, %35 : vector<64x128xf32>
    %41 = arith.mulf %40, %35 : vector<64x128xf32>
    %42 = arith.addf %35, %41 : vector<64x128xf32>
    %cst_20 = arith.constant 0.797884583 : f32
    %43 = vector.broadcast %cst_20 : f32 to vector<64x128xf32>
    %44 = arith.mulf %43, %42 : vector<64x128xf32>
    %45 = math.tanh %44 : vector<64x128xf32>
    %cst_21 = arith.constant 1.000000e+00 : f32
    %46 = vector.broadcast %cst_21 : f32 to vector<64x128xf32>
    %47 = arith.addf %46, %45 : vector<64x128xf32>
    %48 = arith.mulf %37, %47 : vector<64x128xf32>
    %c0_22 = arith.constant 0 : index
    %c0_23 = arith.constant 0 : index
    %49 = vector.load %arg6[%c0_22, %c0_23] : memref<64x128xf32, #tpu.memory_space<vmem>>, vector<64x128xf32>
    tpu.vector_store %arg6[%c0_22, %c0_23], %48 {strides = array<i32>} : memref<64x128xf32, #tpu.memory_space<vmem>>, vector<64x128xf32>,
    return
  }
  func.func @transform_0(%arg0: i32) -> (i32, i32) {
    %c0_i32 = arith.constant 0 : i32
    %c0_i32_0 = arith.constant 0 : i32
    return %c0_i32, %arg0 : i32, i32
  }
  func.func @transform_1(%arg0: i32) -> (i32, i32) {
    %c1_i32 = arith.constant 1 : i32
    %0 = arith.addi %arg0, %c1_i32 : i32
    %c0_i32 = arith.constant 0 : i32
    %c0_i32_0 = arith.constant 0 : i32
    return %c0_i32, %0 : i32, i32
  }
  func.func @transform_2(%arg0: i32) -> (i32, i32) {
    %c0_i32 = arith.constant 0 : i32
    %c0_i32_0 = arith.constant 0 : i32
    %c0_i32_1 = arith.constant 0 : i32
    return %c0_i32, %c0_i32_0 : i32, i32
  }
  func.func @transform_3(%arg0: i32) -> (i32, i32) {
    %c0_i32 = arith.constant 0 : i32
    %c0_i32_0 = arith.constant 0 : i32
    %c0_i32_1 = arith.constant 0 : i32
    return %c0_i32, %c0_i32_0 : i32, i32
  }
  func.func @transform_4(%arg0: i32) -> (i32, i32) {
    %c0_i32 = arith.constant 0 : i32
    %c0_i32_0 = arith.constant 0 : i32
    %c0_i32_1 = arith.constant 0 : i32
    return %c0_i32, %c0_i32_0 : i32, i32
  }
  func.func @transform_5(%arg0: i32) -> (i32, i32) {
    %c0_i32 = arith.constant 0 : i32
    %c0_i32_0 = arith.constant 0 : i32
    return %c0_i32, %arg0 : i32, i32
  }
}

</mosaic_0001>

<llo_original>
// kernel: tpu_custom_call.1
$region0: #{tpu_custom_call.1}
  #allocation0 [shape = 'u32[]', space=smem, size = 0x4, offset = 0x4, fixed_abs, tag = 'smem constant byte address 0x4 - core index']
  #allocation1 [shape = 'u32[144,128]{1,0:T(1,128)}', space=vmem, size = 0x12000, scoped, tag = 'internal scratch']
  %s0 = inlined_call_operand.hbm [shape: bf16[32,768], index: 0, kind: input, shape index: {}]
  %s1 = inlined_call_operand.hbm [shape: bf16[32,768], index: 1, kind: input, shape index: {}]
  %s2 = inlined_call_operand.hbm [shape: bf16[64,288], index: 2, kind: input, shape index: {}]
  %s3 = inlined_call_operand.vmem [shape: f32[64,1], index: 3, kind: input, shape index: {}]
  %s4 = inlined_call_operand.vmem [shape: bf16[3,128], index: 4, kind: input, shape index: {}]
  %s5 = inlined_call_operand.hbm [shape: f32[64,640], index: 5, kind: output, shape index: {}]
  %s6 = sld [smem:[#allocation0]]
  $region65: #{tpu_custom_call.1} parent=0
    _
  %s8 = ssub.s32 1, %s6
  %s9 = scalar_select 0, %s8, %s6
  $region1: #{tpu_custom_call.1} parent=0
    #allocation2 [shape = 'u8[16384]{0}', space=vmem, size = 0x4000, scoped, tag = 'input window, operand 0']
    #allocation3 [shape = 's32[2]{0}', space=sflag, size = 0x8, scoped, tag = 'scoped memory for tpu_custom_call.1']
    #allocation4 [shape = 's32[2]{0}', space=sflag, size = 0x8, scoped, tag = 'scoped memory for tpu_custom_call.1']
    #allocation5 [shape = 'u8[16384]{0}', space=vmem, size = 0x4000, scoped, tag = 'input window, operand 1']
    #allocation6 [shape = 's32[2]{0}', space=sflag, size = 0x8, scoped, tag = 'scoped memory for tpu_custom_call.1']
    #allocation7 [shape = 'u8[49152]{0}', space=vmem, size = 0xc000, scoped, tag = 'input window, operand 2, single buffered']
    #allocation8 [shape = 'u8[65536]{0}', space=vmem, size = 0x10000, scoped, tag = 'output window, operand 0']
    %10 = vsyncpa [#allocation3], 0
    %s11 = scalar_lea.sflag [#allocation3], 1
    %12 = vsyncpa %s11, 0
    %13 = vsyncpa [#allocation6], 0
    %s14 = scalar_lea.sflag [#allocation6], 1
    %15 = vsyncpa %s14, 0
    %16 = vsyncpa [#allocation4], 0
    %s17 = scalar_lea.sflag [#allocation4], 1
    %18 = vsyncpa %s17, 0
    loop: start=0, step=1, limit=7
    $region2: #{tpu_custom_call.1} parent=1 // loop_pre_header
      _
    $region3: #{tpu_custom_call.1} parent=1 // loop_header
      %s20 = sphi 0, %s24
      %p21 = scmp.ge.s32.totalorder %s20, 7
      %s30 = sphi 0, %s32
      %s33 = sphi 0, %s30
      %s34 = sphi 0, %s33
      %s50 = sphi 0, %s34
      %s58 = sphi 0, %s60
      %s61 = sphi 0, %s58
      %s62 = sphi 0, %s61
      %s78 = sphi 0, %s62
      %s82 = sphi 0, %s82
      %s84 = sphi 0, %s82
      %s85 = sphi 0, %s84
      %s99 = sphi 0, %s85
      %s103 = sphi 0, %s103
      %s105 = sphi 0, %s103
      %s106 = sphi 0, %s105
      %s120 = sphi 0, %s106
      %s124 = sphi 0, %s124
      %s126 = sphi 0, %s124
      %s127 = sphi 0, %s126
      %s141 = sphi 0, %s127
      %s147 = sphi 0, %s149
      %s150 = sphi 0, %s147
      %s151 = sphi 0, %s150
      %s167 = sphi 0, %s151
    $region4: #{tpu_custom_call.1} parent=1 // loop_header_branch
      %23 = sbr.rel (%p21) target = $region8
    $region5: #{tpu_custom_call.1} parent=1 // loop_body
      %s25 = ssub.s32 %s20, 1
      %s26 = ssub.s32 %s20, 2
      %s27 = sadd.s32 %s20, 1
      %s28 = ssub.s32 %s20, %s27
      %p29 = scmp.eq.s32.totalorder %s28, 0
      %s31 = sadd.s32 %s30, 1
      %s32 = scalar_select %p29, %s30, %s31
      %p35 = pneg %p29
      %p36 = scmp.eq.s32.totalorder %s20, 4
      %p37 = por %p35, %p36
      %p38 = scmp.ne.s32.totalorder %s30, %s33
      %p39 = scmp.eq.s32.totalorder %s20, 0
      %p40 = por %p38, %p39
      %p41 = scmp.ne.s32.totalorder %s30, %s33
      %p42 = scmp.eq.s32.totalorder %s25, 4
      %p43 = por %p41, %p42
      %p44 = scmp.ne.s32.totalorder %s33, %s34
      %p45 = scmp.eq.s32.totalorder %s25, 0
      %p46 = por %p44, %p45
      %p47 = scmp.ne.s32.totalorder %s33, %s34
      %p48 = scmp.eq.s32.totalorder %s26, 4
      %p49 = por %p47, %p48
      %p51 = scmp.ne.s32.totalorder %s34, %s50
      %p52 = scmp.eq.s32.totalorder %s26, 0
      %p53 = por %p51, %p52
      %s54 = sadd.s32 %s20, 1
      %s55 = sadd.s32 %s27, 1
      %s56 = ssub.s32 %s54, %s55
      %p57 = scmp.eq.s32.totalorder %s56, 0
      %s59 = sadd.s32 %s58, 1
      %s60 = scalar_select %p57, %s58, %s59
      %p63 = pneg %p57
      %p64 = scmp.eq.s32.totalorder %s20, 4
      %p65 = por %p63, %p64
      %p66 = scmp.ne.s32.totalorder %s58, %s61
      %p67 = scmp.eq.s32.totalorder %s20, 0
      %p68 = por %p66, %p67
      %p69 = scmp.ne.s32.totalorder %s58, %s61
      %p70 = scmp.eq.s32.totalorder %s25, 4
      %p71 = por %p69, %p70
      %p72 = scmp.ne.s32.totalorder %s61, %s62
      %p73 = scmp.eq.s32.totalorder %s25, 0
      %p74 = por %p72, %p73
      %p75 = scmp.ne.s32.totalorder %s61, %s62
      %p76 = scmp.eq.s32.totalorder %s26, 4
      %p77 = por %p75, %p76
      %p79 = scmp.ne.s32.totalorder %s62, %s78
      %p80 = scmp.eq.s32.totalorder %s26, 0
      %p81 = por %p79, %p80
      %s83 = sadd.s32 %s82, 1
      %p86 = scmp.eq.s32.totalorder %s20, 4
      %p87 = scmp.ne.s32.totalorder %s82, %s84
      %p88 = scmp.eq.s32.totalorder %s20, 0
      %p89 = por %p87, %p88
      %p90 = scmp.ne.s32.totalorder %s82, %s84
      %p91 = scmp.eq.s32.totalorder %s25, 4
      %p92 = por %p90, %p91
      %p93 = scmp.ne.s32.totalorder %s84, %s85
      %p94 = scmp.eq.s32.totalorder %s25, 0
      %p95 = por %p93, %p94
      %p96 = scmp.ne.s32.totalorder %s84, %s85
      %p97 = scmp.eq.s32.totalorder %s26, 4
      %p98 = por %p96, %p97
      %p100 = scmp.ne.s32.totalorder %s85, %s99
      %p101 = scmp.eq.s32.totalorder %s26, 0
      %p102 = por %p100, %p101
      %s104 = sadd.s32 %s103, 1
      %p107 = scmp.eq.s32.totalorder %s20, 4
      %p108 = scmp.ne.s32.totalorder %s103, %s105
      %p109 = scmp.eq.s32.totalorder %s20, 0
      %p110 = por %p108, %p109
      %p111 = scmp.ne.s32.totalorder %s103, %s105
      %p112 = scmp.eq.s32.totalorder %s25, 4
      %p113 = por %p111, %p112
      %p114 = scmp.ne.s32.totalorder %s105, %s106
      %p115 = scmp.eq.s32.totalorder %s25, 0
      %p116 = por %p114, %p115
      %p117 = scmp.ne.s32.totalorder %s105, %s106
      %p118 = scmp.eq.s32.totalorder %s26, 4
      %p119 = por %p117, %p118
      %p121 = scmp.ne.s32.totalorder %s106, %s120
      %p122 = scmp.eq.s32.totalorder %s26, 0
      %p123 = por %p121, %p122
      %s125 = sadd.s32 %s124, 1
      %p128 = scmp.eq.s32.totalorder %s20, 4
      %p129 = scmp.ne.s32.totalorder %s124, %s126
      %p130 = scmp.eq.s32.totalorder %s20, 0
      %p131 = por %p129, %p130
      %p132 = scmp.ne.s32.totalorder %s124, %s126
      %p133 = scmp.eq.s32.totalorder %s25, 4
      %p134 = por %p132, %p133
      %p135 = scmp.ne.s32.totalorder %s126, %s127
      %p136 = scmp.eq.s32.totalorder %s25, 0
      %p137 = por %p135, %p136
      %p138 = scmp.ne.s32.totalorder %s126, %s127
      %p139 = scmp.eq.s32.totalorder %s26, 4
      %p140 = por %p138, %p139
      %p142 = scmp.ne.s32.totalorder %s127, %s141
      %p143 = scmp.eq.s32.totalorder %s26, 0
      %p144 = por %p142, %p143
      %s145 = ssub.s32 %s20, %s27
      %p146 = scmp.eq.s32.totalorder %s145, 0
      %s148 = sadd.s32 %s147, 1
      %s149 = scalar_select %p146, %s147, %s148
      %p152 = pneg %p146
      %p153 = scmp.eq.s32.totalorder %s20, 4
      %p154 = por %p152, %p153
      %p155 = scmp.ne.s32.totalorder %s147, %s150
      %p156 = scmp.eq.s32.totalorder %s20, 0
      %p157 = por %p155, %p156
      %p158 = scmp.ne.s32.totalorder %s147, %s150
      %p159 = scmp.eq.s32.totalorder %s25, 4
      %p160 = por %p158, %p159
      %p161 = scmp.ne.s32.totalorder %s150, %s151
      %p162 = scmp.eq.s32.totalorder %s25, 0
      %p163 = por %p161, %p162
      %p164 = scmp.ne.s32.totalorder %s150, %s151
      %p165 = scmp.eq.s32.totalorder %s26, 4
      %p166 = por %p164, %p165
      %p168 = scmp.ne.s32.totalorder %s151, %s167
      %p169 = scmp.eq.s32.totalorder %s26, 0
      %p170 = por %p168, %p169
      %p171 = scmp.le.s32.totalorder 1, %s20
      %p172 = scmp.lt.s32.totalorder %s20, 6
      %p173 = pnand %p171, %p172
      %p174 = pneg %p173
      // Predicated region
      $region9: #{tpu_custom_call.1} parent=5 // pred_check
        _
      $region10: #{tpu_custom_call.1} parent=5 // pred_check_branch
        %176 = sbr.rel (%p173) target = $region12
      $region11: #{tpu_custom_call.1} parent=5 // pred_region
        %s177 = ssub.s32 %s20, 1
        // Predicated region
        $region13: #{tpu_custom_call.1} parent=11 // pred_check
          %p178 = pneg %p95
        $region14: #{tpu_custom_call.1} parent=11 // pred_check_branch
          %180 = sbr.rel (%p178) target = $region16
        $region15: #{tpu_custom_call.1} parent=11 // pred_region
          %s182 = ssub.s32 1536, 1536
          %183 = vsyncadd [#allocation6], %s182
          %s184 = sshll.u32 [#allocation7], 4
          %s185 = int_to_ptr.vmem [resolvable:$true] %s184
          %190 = dma.hbm_to_vmem [thread:$0]  %s2, 1536, %s185, [#allocation6], 192, 192, 12
        $region16: #{tpu_custom_call.1} parent=11 // pred_fallthru
          _
        // Predicated region
        $region17: #{tpu_custom_call.1} parent=11 // pred_check
          %p191 = pneg %p116
        $region18: #{tpu_custom_call.1} parent=11 // pred_check_branch
          %193 = sbr.rel (%p191) target = $region20
        $region19: #{tpu_custom_call.1} parent=11 // pred_region
          _
        $region20: #{tpu_custom_call.1} parent=11 // pred_fallthru
          _
        // Predicated region
        $region21: #{tpu_custom_call.1} parent=11 // pred_check
          %p194 = pneg %p137
        $region22: #{tpu_custom_call.1} parent=11 // pred_check_branch
          %196 = sbr.rel (%p194) target = $region24
        $region23: #{tpu_custom_call.1} parent=11 // pred_region
          _
        $region24: #{tpu_custom_call.1} parent=11 // pred_fallthru
          _
      $region12: #{tpu_custom_call.1} parent=5 // pred_fallthru
        _
      %p197 = scmp.lt.s32.totalorder %s20, 5
      // Predicated region
      $region25: #{tpu_custom_call.1} parent=5 // pred_check
        %p198 = pneg %p197
      $region26: #{tpu_custom_call.1} parent=5 // pred_check_branch
        %200 = sbr.rel (%p198) target = $region28
      $region27: #{tpu_custom_call.1} parent=5 // pred_region
        // Predicated region
        $region29: #{tpu_custom_call.1} parent=27 // pred_check
          %p201 = pneg %p40
        $region30: #{tpu_custom_call.1} parent=27 // pred_check_branch
          %203 = sbr.rel (%p201) target = $region32
        $region31: #{tpu_custom_call.1} parent=27 // pred_region
          %s204 = sand.u32 %s30, 1
          %s205 = scalar_lea.sflag [#allocation3], %s204
          %s206 = sand.u32 %s30, 1
          %s207 = smul.addr %s206, 16
          %s208 = scalar_lea.vmem [#allocation2], %s207
          %s210 = ssub.s32 256, 256
          %211 = vsyncadd %s205, %s210
          %s212 = smul.addr %s20, 64
          %s213 = scalar_lea.hbm %s0, %s212
          %s214 = sshll.u32 %s208, 4
          %s215 = int_to_ptr.vmem [resolvable:$true] %s214
          %220 = dma.hbm_to_vmem [thread:$0]  %s213, 256, %s215, %s205, 384, 64, 4
        $region32: #{tpu_custom_call.1} parent=27 // pred_fallthru
          _
        // Predicated region
        $region33: #{tpu_custom_call.1} parent=27 // pred_check
          %p221 = pneg %p68
        $region34: #{tpu_custom_call.1} parent=27 // pred_check_branch
          %223 = sbr.rel (%p221) target = $region36
        $region35: #{tpu_custom_call.1} parent=27 // pred_region
          %s224 = sand.u32 %s20, 1
          %s225 = scalar_lea.sflag [#allocation6], %s224
          %s226 = sand.u32 %s58, 1
          %s227 = smul.addr %s226, 16
          %s228 = scalar_lea.vmem [#allocation5], %s227
          %s229 = sadd.s32 %s20, 1
          %s231 = ssub.s32 256, 256
          %232 = vsyncadd %s225, %s231
          %s233 = smul.addr %s229, 64
          %s234 = scalar_lea.hbm %s1, %s233
          %s235 = sshll.u32 %s228, 4
          %s236 = int_to_ptr.vmem [resolvable:$true] %s235
          %241 = dma.hbm_to_vmem [thread:$0]  %s234, 256, %s236, %s225, 384, 64, 4
        $region36: #{tpu_custom_call.1} parent=27 // pred_fallthru
          _
      $region28: #{tpu_custom_call.1} parent=5 // pred_fallthru
        _
      %p242 = scmp.le.s32.totalorder 1, %s20
      %p243 = scmp.lt.s32.totalorder %s20, 6
      %p244 = pnand %p242, %p243
      %p245 = pneg %p244
      // Predicated region
      $region37: #{tpu_custom_call.1} parent=5 // pred_check
        _
      $region38: #{tpu_custom_call.1} parent=5 // pred_check_branch
        %247 = sbr.rel (%p244) target = $region40
      $region39: #{tpu_custom_call.1} parent=5 // pred_region
        %s248 = ssub.s32 %s20, 1
        %s249 = sand.u32 %s33, 1
        %s250 = scalar_lea.sflag [#allocation3], %s249
        %s251 = sand.u32 %s33, 1
        %s252 = smul.addr %s251, 16
        %s253 = scalar_lea.vmem [#allocation2], %s252
        // Predicated region
        $region41: #{tpu_custom_call.1} parent=39 // pred_check
          %p254 = pneg %p46
        $region42: #{tpu_custom_call.1} parent=39 // pred_check_branch
          %256 = sbr.rel (%p254) target = $region44
        $region43: #{tpu_custom_call.1} parent=39 // pred_region
          %257 = dma.done %s250, 256
        $region44: #{tpu_custom_call.1} parent=39 // pred_fallthru
          _
        %s258 = sand.u32 %s25, 1
        %s259 = scalar_lea.sflag [#allocation6], %s258
        %s260 = sand.u32 %s61, 1
        %s261 = smul.addr %s260, 16
        %s262 = scalar_lea.vmem [#allocation5], %s261
        // Predicated region
        $region45: #{tpu_custom_call.1} parent=39 // pred_check
          %p263 = pneg %p74
        $region46: #{tpu_custom_call.1} parent=39 // pred_check_branch
          %265 = sbr.rel (%p263) target = $region48
        $region47: #{tpu_custom_call.1} parent=39 // pred_region
          %266 = dma.done %s259, 256
        $region48: #{tpu_custom_call.1} parent=39 // pred_fallthru
          _
        // Predicated region
        $region49: #{tpu_custom_call.1} parent=39 // pred_check
          %p267 = pneg %p95
        $region50: #{tpu_custom_call.1} parent=39 // pred_check_branch
          %269 = sbr.rel (%p267) target = $region52
        $region51: #{tpu_custom_call.1} parent=39 // pred_region
          %270 = dma.done [#allocation6], 1536
        $region52: #{tpu_custom_call.1} parent=39 // pred_fallthru
          _
        %s271 = sand.u32 %s33, 1
        %s272 = scalar_lea.sflag [#allocation3], %s271
        %s273 = sand.u32 %s33, 1
        %s274 = smul.addr %s273, 16
        %s275 = scalar_lea.vmem [#allocation2], %s274
        %p276 = pneg %p46
        %p277 = pneg %p43
        %s278 = sand.u32 %s25, 1
        %s279 = scalar_lea.sflag [#allocation6], %s278
        %s280 = sand.u32 %s61, 1
        %s281 = smul.addr %s280, 16
        %s282 = scalar_lea.vmem [#allocation5], %s281
        %p283 = pneg %p74
        %p284 = pneg %p71
        %p285 = pneg %p95
        %p286 = pneg %p92
        %p287 = pneg %p116
        %p288 = pneg %p113
        %p289 = pneg %p137
        %p290 = pneg %p134
        %p291 = pneg %p163
        %p292 = pneg %p160
        %s293 = sand.u32 %s150, 1
        %s294 = scalar_lea.sflag [#allocation4], %s293
        %s295 = sand.u32 %s150, 1
        %s296 = smul.addr %s295, 64
        %s297 = scalar_lea.vmem [#allocation8], %s296
        %s298 = sadd.s32 %s25, 1
        %v300 = vld [vmem:[%s253] sm:$0xf]
        %v301 = vld [vmem:[%s253 + $0x4] sm:$0xf]
        %v302 = vld [vmem:[%s253 + $0x8] sm:$0xf]
        %v303 = vld [vmem:[%s253 + $0xc] sm:$0xf]
        %v304 = vld [vmem:[%s262] sm:$0xf]
        %v305 = vld [vmem:[%s262 + $0x4] sm:$0xf]
        %v306 = vld [vmem:[%s262 + $0x8] sm:$0xf]
        %v307 = vld [vmem:[%s262 + $0xc] sm:$0xf]
        %v312 = vunpack.c.l.b16 %v300
        %v313 = vunpack.c.l.b16 %v301
        %v314 = vunpack.c.l.b16 %v302
        %v315 = vunpack.c.l.b16 %v303
        %v316 = vpack.c.b16 %v313, %v312
        %v317 = vpack.c.b16 %v315, %v314
        %v324 = vunpack.c.l.b16 %v304
        %v325 = vunpack.c.l.b16 %v305
        %v326 = vunpack.c.l.b16 %v306
        %v327 = vunpack.c.l.b16 %v307
        %v328 = vpack.c.b16 %v325, %v324
        %v329 = vpack.c.b16 %v327, %v326
        %v332 = vld [vmem:[%s4] sm:$0x1]
        %v334 = vpack.i.b16 %v332, %v332
        %v336 = vlaneseq
        %v337 = vshrl.u32 %v336, 7
        %v338 = vsub.s32 0, %v337
        %v339 = vrot.slane %v334, %v338
        %v340 = vmul.bf16 %v316, %v339
        %v341 = vmul.bf16 %v317, %v339
        %v342 = vld [vmem:[%s4] sm:$0x2]
        %v344 = vpack.i.b16 %v342, %v342
        %v346 = vlaneseq
        %v347 = vshrl.u32 %v346, 7
        %v348 = vsub.s32 1, %v347
        %v349 = vrot.slane %v344, %v348
        %351 = vrot.lane.b32.xlu0 %v349, 2
        %v352 = vpop.permute.xlu0 %351
        %v354 = vmul.bf16 %v316, %v352
        %v355 = vmul.bf16 %v328, %v352
        %v356 = vmul.bf16 %v317, %v352
        %v357 = vmul.bf16 %v329, %v352
        %359 = vrot.lane.b32.xlu0 %v339, 16
        %v360 = vpop.permute.xlu0 %359
        %v362 = vmul.bf16 %v316, %v360
        %v363 = vmul.bf16 %v328, %v360
        %v364 = vmul.bf16 %v317, %v360
        %v365 = vmul.bf16 %v329, %v360
        %366 = vrot.lane.b32.xlu0 %v349, 18
        %v367 = vpop.permute.xlu0 %366
        %v369 = vmul.bf16 %v316, %v367
        %v370 = vmul.bf16 %v328, %v367
        %v371 = vmul.bf16 %v317, %v367
        %v372 = vmul.bf16 %v329, %v367
        %373 = vrot.lane.b32.xlu0 %v339, 32
        %v374 = vpop.permute.xlu0 %373
        %v376 = vmul.bf16 %v316, %v374
        %v377 = vmul.bf16 %v328, %v374
        %v378 = vmul.bf16 %v317, %v374
        %v379 = vmul.bf16 %v329, %v374
        %380 = vrot.lane.b32.xlu0 %v349, 34
        %v381 = vpop.permute.xlu0 %380
        %v383 = vmul.bf16 %v316, %v381
        %v384 = vmul.bf16 %v328, %v381
        %v385 = vmul.bf16 %v317, %v381
        %v386 = vmul.bf16 %v329, %v381
        %387 = vrot.lane.b32.xlu0 %v316, 127
        %v388 = vpop.permute.xlu0 %387
        %389 = vrot.lane.b32.xlu0 %v328, 127
        %v390 = vpop.permute.xlu0 %389
        %391 = vrot.lane.b32.xlu0 %v317, 127
        %v392 = vpop.permute.xlu0 %391
        %393 = vrot.lane.b32.xlu0 %v329, 127
        %v394 = vpop.permute.xlu0 %393
        %vm395 = vcmask 1039360
        %v396 = vsel %vm395, %v388, %v390
        %v397 = vsel %vm395, %v392, %v394
        %404 = vrot.lane.b32.xlu0 %v354, 126
        %v405 = vpop.permute.xlu0 %404
        %406 = vrot.lane.b32.xlu0 %v355, 126
        %v407 = vpop.permute.xlu0 %406
        %408 = vrot.lane.b32.xlu0 %v356, 126
        %v409 = vpop.permute.xlu0 %408
        %410 = vrot.lane.b32.xlu0 %v357, 126
        %v411 = vpop.permute.xlu0 %410
        %vm412 = vcmask 1031168
        %v413 = vsel %vm412, %v405, %v407
        %v414 = vsel %vm412, %v409, %v411
        %421 = vrot.lane.b32.xlu0 %v362, 112
        %v422 = vpop.permute.xlu0 %421
        %423 = vrot.lane.b32.xlu0 %v363, 112
        %v424 = vpop.permute.xlu0 %423
        %425 = vrot.lane.b32.xlu0 %v364, 112
        %v426 = vpop.permute.xlu0 %425
        %427 = vrot.lane.b32.xlu0 %v365, 112
        %v428 = vpop.permute.xlu0 %427
        %vm429 = vcmask 916480
        %v430 = vsel %vm429, %v422, %v424
        %v431 = vsel %vm429, %v426, %v428
        %434 = vrot.lane.b32.xlu0 %v316, 111
        %v435 = vpop.permute.xlu0 %434
        %436 = vrot.lane.b32.xlu0 %v328, 111
        %v437 = vpop.permute.xlu0 %436
        %438 = vrot.lane.b32.xlu0 %v317, 111
        %v439 = vpop.permute.xlu0 %438
        %440 = vrot.lane.b32.xlu0 %v329, 111
        %v441 = vpop.permute.xlu0 %440
        %vm442 = vcmask 908288
        %v443 = vsel %vm442, %v435, %v437
        %v444 = vsel %vm442, %v439, %v441
        %451 = vrot.lane.b32.xlu0 %v369, 110
        %v452 = vpop.permute.xlu0 %451
        %453 = vrot.lane.b32.xlu0 %v370, 110
        %v454 = vpop.permute.xlu0 %453
        %455 = vrot.lane.b32.xlu0 %v371, 110
        %v456 = vpop.permute.xlu0 %455
        %457 = vrot.lane.b32.xlu0 %v372, 110
        %v458 = vpop.permute.xlu0 %457
        %vm459 = vcmask 900096
        %v460 = vsel %vm459, %v452, %v454
        %v461 = vsel %vm459, %v456, %v458
        %468 = vrot.lane.b32.xlu0 %v376, 96
        %v469 = vpop.permute.xlu0 %468
        %470 = vrot.lane.b32.xlu0 %v377, 96
        %v471 = vpop.permute.xlu0 %470
        %472 = vrot.lane.b32.xlu0 %v378, 96
        %v473 = vpop.permute.xlu0 %472
        %474 = vrot.lane.b32.xlu0 %v379, 96
        %v475 = vpop.permute.xlu0 %474
        %vm476 = vcmask 785408
        %v477 = vsel %vm476, %v469, %v471
        %v478 = vsel %vm476, %v473, %v475
        %481 = vrot.lane.b32.xlu0 %v316, 95
        %v482 = vpop.permute.xlu0 %481
        %483 = vrot.lane.b32.xlu0 %v328, 95
        %v484 = vpop.permute.xlu0 %483
        %485 = vrot.lane.b32.xlu0 %v317, 95
        %v486 = vpop.permute.xlu0 %485
        %487 = vrot.lane.b32.xlu0 %v329, 95
        %v488 = vpop.permute.xlu0 %487
        %vm489 = vcmask 777216
        %v490 = vsel %vm489, %v482, %v484
        %v491 = vsel %vm489, %v486, %v488
        %498 = vrot.lane.b32.xlu0 %v383, 94
        %v499 = vpop.permute.xlu0 %498
        %500 = vrot.lane.b32.xlu0 %v384, 94
        %v501 = vpop.permute.xlu0 %500
        %502 = vrot.lane.b32.xlu0 %v385, 94
        %v503 = vpop.permute.xlu0 %502
        %504 = vrot.lane.b32.xlu0 %v386, 94
        %v505 = vpop.permute.xlu0 %504
        %vm506 = vcmask 769024
        %v507 = vsel %vm506, %v499, %v501
        %v508 = vsel %vm506, %v503, %v505
        %v511 = vld [vmem:[#allocation7] sm:$0xff]
        %v512 = vld [vmem:[#allocation7 + $0x8] sm:$0xf]
        %v513 = vld [vmem:[#allocation7 + $0xc] sm:$0xff]
        %v514 = vld [vmem:[#allocation7 + $0x14] sm:$0xf]
        %v515 = vld [vmem:[#allocation7 + $0x18] sm:$0xff]
        %v516 = vld [vmem:[#allocation7 + $0x20] sm:$0xf]
        %v517 = vld [vmem:[#allocation7 + $0x24] sm:$0xff]
        %v518 = vld [vmem:[#allocation7 + $0x2c] sm:$0xf]
        %v519 = vld [vmem:[#allocation7 + $0x30] sm:$0xff]
        %v520 = vld [vmem:[#allocation7 + $0x38] sm:$0xf]
        %v521 = vld [vmem:[#allocation7 + $0x3c] sm:$0xff]
        %v522 = vld [vmem:[#allocation7 + $0x44] sm:$0xf]
        %v523 = vld [vmem:[#allocation7 + $0x48] sm:$0xff]
        %v524 = vld [vmem:[#allocation7 + $0x50] sm:$0xf]
        %v525 = vld [vmem:[#allocation7 + $0x54] sm:$0xff]
        %v526 = vld [vmem:[#allocation7 + $0x5c] sm:$0xf]
        %v527 = vld [vmem:[%s3] sm:$0xff]
        %v528 = vld [vmem:[%s3 + $0x8] sm:$0xff]
        %v529 = vld [vmem:[%s3 + $0x10] sm:$0xff]
        %v530 = vld [vmem:[%s3 + $0x18] sm:$0xff]
        %v531 = vld [vmem:[%s3 + $0x20] sm:$0xff]
        %v532 = vld [vmem:[%s3 + $0x28] sm:$0xff]
        %v533 = vld [vmem:[%s3 + $0x30] sm:$0xff]
        %v534 = vld [vmem:[%s3 + $0x38] sm:$0xff]
        %536 = vset.pattern.permute.xlu0 0
        %537 = vperm.xlu0 %536, %v527
        %v538 = vpop.permute.xlu0 %537
        %541 = vset.pattern.permute.xlu0 0
        %542 = vperm.xlu0 %541, %v528
        %v543 = vpop.permute.xlu0 %542
        %546 = vset.pattern.permute.xlu0 0
        %547 = vperm.xlu0 %546, %v529
        %v548 = vpop.permute.xlu0 %547
        %551 = vset.pattern.permute.xlu0 0
        %552 = vperm.xlu0 %551, %v530
        %v553 = vpop.permute.xlu0 %552
        %556 = vset.pattern.permute.xlu0 0
        %557 = vperm.xlu0 %556, %v531
        %v558 = vpop.permute.xlu0 %557
        %561 = vset.pattern.permute.xlu0 0
        %562 = vperm.xlu0 %561, %v532
        %v563 = vpop.permute.xlu0 %562
        %566 = vset.pattern.permute.xlu0 0
        %567 = vperm.xlu0 %566, %v533
        %v568 = vpop.permute.xlu0 %567
        %571 = vset.pattern.permute.xlu0 0
        %572 = vperm.xlu0 %571, %v534
        %v573 = vpop.permute.xlu0 %572
        %v591 = vunpack.c.l.b16 %v511
        %v592 = vunpack.c.h.b16 %v511
        %v593 = vunpack.c.l.b16 %v512
        %v594 = vunpack.c.l.b16 %v513
        %v595 = vunpack.c.h.b16 %v513
        %v596 = vunpack.c.l.b16 %v514
        %v597 = vunpack.c.l.b16 %v515
        %v598 = vunpack.c.h.b16 %v515
        %v599 = vunpack.c.l.b16 %v516
        %v600 = vunpack.c.l.b16 %v517
        %v601 = vunpack.c.h.b16 %v517
        %v602 = vunpack.c.l.b16 %v518
        %v603 = vunpack.c.l.b16 %v519
        %v604 = vunpack.c.h.b16 %v519
        %v605 = vunpack.c.l.b16 %v520
        %v606 = vunpack.c.l.b16 %v521
        %v607 = vunpack.c.h.b16 %v521
        %v608 = vunpack.c.l.b16 %v522
        %v609 = vunpack.c.l.b16 %v523
        %v610 = vunpack.c.h.b16 %v523
        %v611 = vunpack.c.l.b16 %v524
        %v612 = vunpack.c.l.b16 %v525
        %v613 = vunpack.c.h.b16 %v525
        %v614 = vunpack.c.l.b16 %v526
        %v615 = vpack.c.b16 %v594, %v591
        %v616 = vpack.c.b16 %v595, %v592
        %v617 = vpack.c.b16 %v596, %v593
        %v618 = vpack.c.b16 %v600, %v597
        %v619 = vpack.c.b16 %v601, %v598
        %v620 = vpack.c.b16 %v602, %v599
        %v621 = vpack.c.b16 %v606, %v603
        %v622 = vpack.c.b16 %v607, %v604
        %v623 = vpack.c.b16 %v608, %v605
        %v624 = vpack.c.b16 %v612, %v609
        %v625 = vpack.c.b16 %v613, %v610
        %v626 = vpack.c.b16 %v614, %v611
        %vm635 = vcmask 261120
        %v637 = vsel %vm635, %v617, 0
        %v640 = vsel %vm635, %v620, 0
        %v643 = vsel %vm635, %v623, 0
        %v646 = vsel %vm635, %v626, 0
        %648 = vmatprep.subr.bf16.mxu0 0
        %649 = vmatpush1.bf16.msra.mxu0 %v431
        %650 = vmatprep.subr.bf16.mxu0 0
        %651 = vmatpush1.bf16.msra.mxu0 %v430
        %652 = vmatprep.subr.bf16.mxu0 0
        %653 = vmatpush1.bf16.msra.mxu0 %v414
        %654 = vmatprep.subr.bf16.mxu0 0
        %655 = vmatpush1.bf16.msra.mxu0 %v413
        %656 = vmatprep.subr.bf16.mxu0 0
        %657 = vmatpush1.bf16.msra.mxu0 %v397
        %658 = vmatprep.subr.bf16.mxu0 0
        %659 = vmatpush1.bf16.msra.mxu0 %v396
        %660 = vmatprep.subr.bf16.mxu0 0
        %661 = vmatpush1.bf16.msra.mxu0 %v341
        %662 = vmatprep.subr.bf16.mxu0 0
        %663 = vmatpush1.bf16.msra.mxu0 %v340
        %664 = vmatprep.subr.bf16.mxu0 0
        %665 = vmatpush2.bf16.msra.mxu0 %v491
        %666 = vmatprep.subr.bf16.mxu0 0
        %667 = vmatpush2.bf16.msra.mxu0 %v490
        %668 = vmatprep.subr.bf16.mxu0 0
        %669 = vmatpush2.bf16.msra.mxu0 %v478
        %670 = vmatprep.subr.bf16.mxu0 0
        %671 = vmatpush2.bf16.msra.mxu0 %v477
        %672 = vmatprep.subr.bf16.mxu0 0
        %673 = vmatpush2.bf16.msra.mxu0 %v461
        %674 = vmatprep.subr.bf16.mxu0 0
        %675 = vmatpush2.bf16.msra.mxu0 %v460
        %676 = vmatprep.subr.bf16.mxu0 0
        %677 = vmatpush2.bf16.msra.mxu0 %v444
        %678 = vmatprep.subr.bf16.mxu0 0
        %679 = vmatpush2.bf16.msra.mxu0 %v443
        %680 = vmatprep.mubr.bf16.mxu0 %v616
        %681 = vmatmul.mubr.bf16.gmra.mxu0 %v615
        %v682 = vpop.f32.mrf.mxu0
        %v683 = vadd.f32 %v538, %v682
        %v684 = vpop.f32.mrf.mxu0
        %v685 = vpop.f32.mrf.mxu0
        %v686 = vadd.f32 %v543, %v685
        %v687 = vpop.f32.mrf.mxu0
        %688 = vmatprep.mubr.bf16.mxu0 %v619
        %689 = vmatmul.mubr.bf16.gmra.mxu0 %v618
        %v690 = vpop.f32.mrf.mxu0
        %v691 = vadd.f32 %v548, %v690
        %v692 = vpop.f32.mrf.mxu0
        %v693 = vpop.f32.mrf.mxu0
        %v694 = vadd.f32 %v553, %v693
        %v695 = vpop.f32.mrf.mxu0
        %696 = vmatprep.mubr.bf16.mxu0 %v622
        %697 = vmatmul.mubr.bf16.gmra.mxu0 %v621
        %v698 = vpop.f32.mrf.mxu0
        %v699 = vadd.f32 %v558, %v698
        %v700 = vpop.f32.mrf.mxu0
        %v701 = vpop.f32.mrf.mxu0
        %v702 = vadd.f32 %v563, %v701
        %v703 = vpop.f32.mrf.mxu0
        %704 = vmatprep.mubr.bf16.mxu0 %v625
        %705 = vmatmul.mubr.bf16.gmra.mxu0 %v624
        %v706 = vpop.f32.mrf.mxu0
        %v707 = vadd.f32 %v568, %v706
        %v708 = vpop.f32.mrf.mxu0
        %v709 = vpop.f32.mrf.mxu0
        %v710 = vadd.f32 %v573, %v709
        %v711 = vpop.f32.mrf.mxu0
        %712 = vdwg.mxu0
        %713 = vmatprep.subr.bf16.mxu0 0
        %714 = vmatpush1.bf16.msra.mxu0 0
        %715 = vmatprep.subr.bf16.mxu0 0
        %716 = vmatpush1.bf16.msra.mxu0 0
        %717 = vmatprep.subr.bf16.mxu0 0
        %718 = vmatpush1.bf16.msra.mxu0 0
        %719 = vmatprep.subr.bf16.mxu0 0
        %720 = vmatpush1.bf16.msra.mxu0 0
        %721 = vmatprep.subr.bf16.mxu0 0
        %722 = vmatpush1.bf16.msra.mxu0 0
        %723 = vmatprep.subr.bf16.mxu0 0
        %724 = vmatpush1.bf16.msra.mxu0 0
        %725 = vmatprep.subr.bf16.mxu0 0
        %726 = vmatpush1.bf16.msra.mxu0 %v508
        %727 = vmatprep.subr.bf16.mxu0 0
        %728 = vmatpush1.bf16.msra.mxu0 %v507
        %729 = vmatprep.subr.bf16.mxu0 0
        %730 = vmatpush2.bf16.msra.mxu0 0
        %731 = vmatprep.subr.bf16.mxu0 0
        %732 = vmatpush2.bf16.msra.mxu0 0
        %733 = vmatprep.subr.bf16.mxu0 0
        %734 = vmatpush2.bf16.msra.mxu0 0
        %735 = vmatprep.subr.bf16.mxu0 0
        %736 = vmatpush2.bf16.msra.mxu0 0
        %737 = vmatprep.subr.bf16.mxu0 0
        %738 = vmatpush2.bf16.msra.mxu0 0
        %739 = vmatprep.subr.bf16.mxu0 0
        %740 = vmatpush2.bf16.msra.mxu0 0
        %741 = vmatprep.subr.bf16.mxu0 0
        %742 = vmatpush2.bf16.msra.mxu0 0
        %743 = vmatprep.subr.bf16.mxu0 0
        %744 = vmatpush2.bf16.msra.mxu0 0
        %745 = vmatprep.mubr.bf16.mxu0 0
        %746 = vmatmul.mubr.bf16.gmra.mxu0 %v637
        %v747 = vpop.f32.mrf.mxu0
        %v748 = vadd.f32 %v683, %v747
        %v749 = vpop.f32.mrf.mxu0
        %v750 = vpop.f32.mrf.mxu0
        %v751 = vadd.f32 %v686, %v750
        %v752 = vpop.f32.mrf.mxu0
        %753 = vmatprep.mubr.bf16.mxu0 0
        %754 = vmatmul.mubr.bf16.gmra.mxu0 %v640
        %v755 = vpop.f32.mrf.mxu0
        %v756 = vadd.f32 %v691, %v755
        %v757 = vpop.f32.mrf.mxu0
        %v758 = vpop.f32.mrf.mxu0
        %v759 = vadd.f32 %v694, %v758
        %v760 = vpop.f32.mrf.mxu0
        %761 = vmatprep.mubr.bf16.mxu0 0
        %762 = vmatmul.mubr.bf16.gmra.mxu0 %v643
        %v763 = vpop.f32.mrf.mxu0
        %v764 = vadd.f32 %v699, %v763
        %v765 = vpop.f32.mrf.mxu0
        %v766 = vpop.f32.mrf.mxu0
        %v767 = vadd.f32 %v702, %v766
        %v768 = vpop.f32.mrf.mxu0
        %769 = vmatprep.mubr.bf16.mxu0 0
        %770 = vmatmul.mubr.bf16.gmra.mxu0 %v646
        %v771 = vpop.f32.mrf.mxu0
        %v772 = vadd.f32 %v707, %v771
        %v773 = vpop.f32.mrf.mxu0
        %v774 = vpop.f32.mrf.mxu0
        %v775 = vadd.f32 %v710, %v774
        %v776 = vpop.f32.mrf.mxu0
        %777 = vdwg.mxu0
        %v778 = vmul.f32 %v748, 0.5
        %v779 = vmul.f32 %v751, 0.5
        %v780 = vmul.f32 %v756, 0.5
        %v781 = vmul.f32 %v759, 0.5
        %v782 = vmul.f32 %v764, 0.5
        %v783 = vmul.f32 %v767, 0.5
        %v784 = vmul.f32 %v772, 0.5
        %v785 = vmul.f32 %v775, 0.5
        %v786 = vmul.f32 %v748, 0.044715
        %v787 = vmul.f32 %v751, 0.044715
        %v788 = vmul.f32 %v756, 0.044715
        %v789 = vmul.f32 %v759, 0.044715
        %v790 = vmul.f32 %v764, 0.044715
        %v791 = vmul.f32 %v767, 0.044715
        %v792 = vmul.f32 %v772, 0.044715
        %v793 = vmul.f32 %v775, 0.044715
        %v794 = vmul.f32 %v786, %v748
        %v795 = vmul.f32 %v787, %v751
        %v796 = vmul.f32 %v788, %v756
        %v797 = vmul.f32 %v789, %v759
        %v798 = vmul.f32 %v790, %v764
        %v799 = vmul.f32 %v791, %v767
        %v800 = vmul.f32 %v792, %v772
        %v801 = vmul.f32 %v793, %v775
        %v802 = vmul.f32 %v794, %v748
        %v803 = vmul.f32 %v795, %v751
        %v804 = vmul.f32 %v796, %v756
        %v805 = vmul.f32 %v797, %v759
        %v806 = vmul.f32 %v798, %v764
        %v807 = vmul.f32 %v799, %v767
        %v808 = vmul.f32 %v800, %v772
        %v809 = vmul.f32 %v801, %v775
        %v810 = vadd.f32 %v748, %v802
        %v811 = vadd.f32 %v751, %v803
        %v812 = vadd.f32 %v756, %v804
        %v813 = vadd.f32 %v759, %v805
        %v814 = vadd.f32 %v764, %v806
        %v815 = vadd.f32 %v767, %v807
        %v816 = vadd.f32 %v772, %v808
        %v817 = vadd.f32 %v775, %v809
        %v818 = vmul.f32 %v810, 0.7978846
        %v819 = vmul.f32 %v811, 0.7978846
        %v820 = vmul.f32 %v812, 0.7978846
        %v821 = vmul.f32 %v813, 0.7978846
        %v822 = vmul.f32 %v814, 0.7978846
        %v823 = vmul.f32 %v815, 0.7978846
        %v824 = vmul.f32 %v816, 0.7978846
        %v825 = vmul.f32 %v817, 0.7978846
        %v826 = vtanh.pop %v818
        %v827 = vtanh.pop %v819
        %v828 = vtanh.pop %v820
        %v829 = vtanh.pop %v821
        %v830 = vtanh.pop %v822
        %v831 = vtanh.pop %v823
        %v832 = vtanh.pop %v824
        %v833 = vtanh.pop %v825
        %v834 = vadd.f32 %v826, 1.0
        %v835 = vadd.f32 %v827, 1.0
        %v836 = vadd.f32 %v828, 1.0
        %v837 = vadd.f32 %v829, 1.0
        %v838 = vadd.f32 %v830, 1.0
        %v839 = vadd.f32 %v831, 1.0
        %v840 = vadd.f32 %v832, 1.0
        %v841 = vadd.f32 %v833, 1.0
        %v842 = vmul.f32 %v778, %v834
        %v843 = vmul.f32 %v779, %v835
        %v844 = vmul.f32 %v780, %v836
        %v845 = vmul.f32 %v781, %v837
        %v846 = vmul.f32 %v782, %v838
        %v847 = vmul.f32 %v783, %v839
        %v848 = vmul.f32 %v784, %v840
        %v849 = vmul.f32 %v785, %v841
        %850 = vst [vmem:[%s297] sm:$0xff] %v842
        %851 = vst [vmem:[%s297 + $0x8] sm:$0xff] %v843
        %852 = vst [vmem:[%s297 + $0x10] sm:$0xff] %v844
        %853 = vst [vmem:[%s297 + $0x18] sm:$0xff] %v845
        %854 = vst [vmem:[%s297 + $0x20] sm:$0xff] %v846
        %855 = vst [vmem:[%s297 + $0x28] sm:$0xff] %v847
        %856 = vst [vmem:[%s297 + $0x30] sm:$0xff] %v848
        %857 = vst [vmem:[%s297 + $0x38] sm:$0xff] %v849
        %s858 = sand.u32 %s150, 1
        %s859 = scalar_lea.sflag [#allocation4], %s858
        %s860 = sand.u32 %s150, 1
        %s861 = smul.addr %s860, 64
        %s862 = scalar_lea.vmem [#allocation8], %s861
        // Predicated region
        $region53: #{tpu_custom_call.1} parent=39 // pred_check
          %p863 = pneg %p160
        $region54: #{tpu_custom_call.1} parent=39 // pred_check_branch
          %865 = sbr.rel (%p863) target = $region56
        $region55: #{tpu_custom_call.1} parent=39 // pred_region
          %s867 = ssub.s32 1024, 1024
          %868 = vsyncadd %s859, %s867
          %s869 = smul.addr %s25, 128
          %s870 = scalar_lea.hbm %s5, %s869
          %s871 = sshll.u32 %s862, 4
          %s872 = int_to_ptr.vmem [resolvable:$true] %s871
          %877 = dma.vmem_to_hbm [thread:$0]  %s872, 1024, %s870, %s859, 128, 640, 8
        $region56: #{tpu_custom_call.1} parent=39 // pred_fallthru
          _
      $region40: #{tpu_custom_call.1} parent=5 // pred_fallthru
        _
      %p878 = scmp.le.s32.totalorder 2, %s20
      // Predicated region
      $region57: #{tpu_custom_call.1} parent=5 // pred_check
        %p879 = pneg %p878
      $region58: #{tpu_custom_call.1} parent=5 // pred_check_branch
        %881 = sbr.rel (%p879) target = $region60
      $region59: #{tpu_custom_call.1} parent=5 // pred_region
        %s882 = ssub.s32 %s20, 2
        // Predicated region
        $region61: #{tpu_custom_call.1} parent=59 // pred_check
          %p883 = pneg %p166
        $region62: #{tpu_custom_call.1} parent=59 // pred_check_branch
          %885 = sbr.rel (%p883) target = $region64
        $region63: #{tpu_custom_call.1} parent=59 // pred_region
          %s886 = sand.u32 %s151, 1
          %s887 = scalar_lea.sflag [#allocation4], %s886
          %s888 = sand.u32 %s151, 1
          %s889 = smul.addr %s888, 64
          %s890 = scalar_lea.vmem [#allocation8], %s889
          %891 = dma.done %s887, 1024
        $region64: #{tpu_custom_call.1} parent=59 // pred_fallthru
          _
      $region60: #{tpu_custom_call.1} parent=5 // pred_fallthru
        _
    $region6: #{tpu_custom_call.1} parent=1 // loop_footer
      %s24 = sadd.s32 1, %s20
    $region7: #{tpu_custom_call.1} parent=1 // loop_footer_branch
      %19 = sbr.rel target = $region3
    $region8: #{tpu_custom_call.1} parent=1 // loop_exit
      _
    %892 = vsyncpa [#allocation3], 1
    %s893 = scalar_lea.sflag [#allocation3], 1
    %894 = vsyncpa %s893, 1
    %895 = vsyncpa [#allocation6], 1
    %s896 = scalar_lea.sflag [#allocation6], 1
    %897 = vsyncpa %s896, 1
    %898 = vsyncpa [#allocation4], 1
    %s899 = scalar_lea.sflag [#allocation4], 1
    %900 = vsyncpa %s899, 1

</llo_original>
